<compile_context>
chip_gen: v6e
topology: v6e:2x2x1
jax: 0.10.0
libtpu: 0.0.40
codegen_flags: <defaults>
</compile_context>

<pallas_src>
import jax
import jax.numpy as jnp
from jax.experimental import pallas as pl
from jax.experimental.pallas import tpu as pltpu


_MAX_CHUNKS = 8               # max concurrent HBM->HBM DMAs per copy
_MIN_CHUNK_BYTES = 512 * 1024  # don't split below this (DMA issue overhead)
_LANE = 128


def _chunk_rows(rows, row_bytes, itemsize):
    """Split `rows` of a (rows, 128) slab into <= _MAX_CHUNKS row ranges.

    Chunk starts are multiples of the dtype's packed sublane count (8 for
    32-bit, 16 for bf16, 32 for int8/fp8) so every DMA sub-rectangle starts on
    a layout-tile boundary; the last chunk absorbs any ragged remainder.
    Returns a list of static (start, size) python ints.
    """
    total_bytes = rows * row_bytes
    n = int(min(_MAX_CHUNKS, max(1, total_bytes // _MIN_CHUNK_BYTES)))
    sub = max(8, 32 // itemsize)
    per = -(-rows // n)                 # ceil(rows / n)
    per = -(-per // sub) * sub          # round up to sublane multiple
    chunks = []
    start = 0
    while start < rows:
        size = min(per, rows - start)
        chunks.append((start, size))
        start += size
    return chunks


def _hbm_copy(slab, chunks):
    """Copy `slab` (1-D or 2-D) to a fresh buffer via direct HBM->HBM DMAs.

    `chunks` is a static list of (start, size) ranges along axis 0 covering
    the whole array.  All DMAs are issued before any wait so they overlap.
    """
    n = len(chunks)
    full = slab.shape[0]
    itemsize = jnp.dtype(slab.dtype).itemsize

    def kernel(x_hbm, o_hbm, sem):
        copies = []
        for idx, (start, size) in enumerate(chunks):
            if start == 0 and size == full:
                src, dst = x_hbm, o_hbm          # whole-array copy, no slicing
            else:
                src = x_hbm.at[pl.ds(start, size)]
                dst = o_hbm.at[pl.ds(start, size)]
            cp = pltpu.make_async_copy(src, dst, sem.at[idx])
            cp.start()                            # issue: keep all in flight
            copies.append(cp)
        for cp in copies:                         # then drain
            cp.wait()

    return pl.pallas_call(
        kernel,
        out_shape=jax.ShapeDtypeStruct(slab.shape, slab.dtype),
        in_specs=[pl.BlockSpec(memory_space=pl.ANY)],
        out_specs=pl.BlockSpec(memory_space=pl.ANY),
        scratch_shapes=[pltpu.SemaphoreType.DMA((n,))],
        cost_estimate=pl.CostEstimate(
            flops=0,
            transcendentals=0,
            bytes_accessed=2 * slab.size * itemsize,
        ),
    )(slab)


def view(inp, *shape):
    """JAX/Pallas equivalent of torch.Tensor.view(*shape).

    The element stream is routed through a Pallas HBM->HBM DMA copy kernel;
    the reshape itself (shape metadata, incl. a single -1 dim) is plain JAX
    glue, exactly mirroring PyTorch's contiguous-view semantics.
    """
    total = inp.size
    shape = list(shape)
    if shape.count(-1) > 1:
        raise ValueError("only one dimension can be inferred")
    if -1 in shape:
        known = 1
        for s in shape:
            if s != -1:
                known *= s
        if known == 0 or total % known != 0:
            raise ValueError(f"cannot infer -1 for shape {shape} with {total} elements")
        shape[shape.index(-1)] = total // known
    prod = 1
    for s in shape:
        prod *= s
    assert prod == total, f"view shape {shape} invalid for {total} elements"
    out_shape = tuple(shape)

    if total == 0:
        # Nothing to copy; pure metadata reshape.
        return jnp.reshape(inp, out_shape)

    dtype = inp.dtype
    itemsize = jnp.dtype(dtype).itemsize

    if total % _LANE == 0:
        # Lane-aligned element count: view the flat stream as a (rows, 128)
        # slab (free, contiguous) and copy it with a few big HBM->HBM DMAs.
        rows = total // _LANE
        slab = jnp.reshape(inp, (rows, _LANE))
        chunks = _chunk_rows(rows, _LANE * itemsize, itemsize)
        out_slab = _hbm_copy(slab, chunks)
        return jnp.reshape(out_slab, out_shape)

    # Non-128-multiple element count: a single whole-array 1-D HBM->HBM DMA.
    # No padding, no post-slice, no VMEM -- alignment is irrelevant here.
    flat = jnp.reshape(inp, (total,))
    out_flat = _hbm_copy(flat, [(0, total)])
    return jnp.reshape(out_flat, out_shape)


class View:
    """Mirror of the PyTorch module: View(*shape)(inp) == inp.view(*shape)."""

    def __init__(self, *shape):
        self.shape = shape

    def __call__(self, inp):
        return view(inp, *self.shape)


if __name__ == "__main__":
    key = jax.random.PRNGKey(0)

    # Small input consistent with a typical NCHW activation: (2, 4, 16, 16).
    x = jax.random.normal(key, (2, 4, 16, 16), dtype=jnp.float32)

    # Module under test: View(2, -1)  ->  inp.view(2, -1)
    mod = View(2, -1)
    y = jax.block_until_ready(mod(x))
    ref = jnp.reshape(x, (2, 4 * 16 * 16))
    assert y.shape == ref.shape, (y.shape, ref.shape)
    assert y.dtype == x.dtype
    assert bool(jnp.all(y == ref))

    # Non-128-aligned path: single whole-array 1-D DMA.
    x2 = jax.random.normal(jax.random.PRNGKey(1), (3, 5, 7), dtype=jnp.float32)
    y2 = jax.block_until_ready(view(x2, -1))
    ref2 = jnp.reshape(x2, (-1,))
    assert y2.shape == ref2.shape
    assert bool(jnp.all(y2 == ref2))

    # Multi-chunk path (>= 1 MiB so >1 concurrent DMA, ragged last chunk rows).
    x3 = jax.random.normal(jax.random.PRNGKey(2), (2, 1050, 128), dtype=jnp.float32)
    y3 = jax.block_until_ready(view(x3, -1, 128))
    ref3 = jnp.reshape(x3, (2100, 128))
    assert y3.shape == ref3.shape
    assert bool(jnp.all(y3 == ref3))

    print("KERNEL_OK")
</pallas_src>

<mosaic_0001>
module attributes {stable_mosaic.version = 11 : i64} {
  func.func @kernel(%arg0: memref<16x128xf32, #tpu.memory_space<any>>, %arg1: memref<16x128xf32, #tpu.memory_space<any>>, %arg2: memref<1x!tpu.dma_semaphore, #tpu.memory_space<semaphore_mem>>) attributes {dimension_semantics = [], scalar_prefetch = 0 : i64, scratch_operands = 1 : i64, tpu.core_type = #tpu.core_type<tc>} {
    %c0_i32 = arith.constant 0 : i32
    %0 = tpu.memref_slice %arg2[%c0_i32] : memref<1x!tpu.dma_semaphore, #tpu.memory_space<semaphore_mem>> -> memref<1x!tpu.dma_semaphore, #tpu.memory_space<semaphore_mem>>
    %1 = tpu.memref_squeeze %0 : memref<1x!tpu.dma_semaphore, #tpu.memory_space<semaphore_mem>> -> memref<!tpu.dma_semaphore, #tpu.memory_space<semaphore_mem>>
    tpu.enqueue_dma source(%arg0 : memref<16x128xf32, #tpu.memory_space<any>>) target(%arg1 : memref<16x128xf32, #tpu.memory_space<any>>) target_semaphore(%1 : memref<!tpu.dma_semaphore, #tpu.memory_space<semaphore_mem>>)
    %c0_i32_0 = arith.constant 0 : i32
    %2 = tpu.memref_slice %arg2[%c0_i32_0] : memref<1x!tpu.dma_semaphore, #tpu.memory_space<semaphore_mem>> -> memref<1x!tpu.dma_semaphore, #tpu.memory_space<semaphore_mem>>
    %3 = tpu.memref_squeeze %2 : memref<1x!tpu.dma_semaphore, #tpu.memory_space<semaphore_mem>> -> memref<!tpu.dma_semaphore, #tpu.memory_space<semaphore_mem>>
    tpu.wait_dma2 semaphore(%3 : memref<!tpu.dma_semaphore, #tpu.memory_space<semaphore_mem>>) src(%arg0 : memref<16x128xf32, #tpu.memory_space<any>>) dst(%arg1 : memref<16x128xf32, #tpu.memory_space<any>>)
    return
  }
}

</mosaic_0001>

<llo_original>
// kernel: tpu_custom_call.1
$region0: #{tpu_custom_call.1}
  #allocation0 [shape = 'u32[]', space=smem, size = 0x4, offset = 0x4, fixed_abs, tag = 'smem constant byte address 0x4 - core index']
  #allocation1 [shape = 'u32[144,128]{1,0:T(1,128)}', space=vmem, size = 0x12000, scoped, tag = 'internal scratch']
  #allocation2 [shape = 's32[1]{0}', space=sflag, size = 0x4, scoped, tag = 'scratch operand']
  #allocation3 [shape = 's32[]', space=sflag, size = 0x4, offset = 0, fixed_abs, tag = 'sflag constant byte address 0x0 - dummy sync flag']
  #allocation4 [shape = 'u32[0]{0}', space=smem, size = 0, offset = 0, fixed_abs, tag = 'smem constant byte address 0x0 - null']
  %s0 = inlined_call_operand.hbm [shape: f32[16,128], index: 0, kind: input, shape index: {}]
  %s1 = inlined_call_operand.hbm [shape: f32[16,128], index: 1, kind: output, shape index: {}]
  %s2 = sld [smem:[#allocation0]]
  $region2: #{tpu_custom_call.1} parent=0
    _
  %s4 = ssub.s32 1, %s2
  %s5 = scalar_select 0, %s4, %s2
  %s7 = sshll.u32 1, 14
  %s8 = sxor.u32 4294967295, %s7
  %12 = dma.general %s0, 256, %s1, [#allocation2], 131072, [#allocation4], 0, 0
  %s13 = smul.u32 16, 1
  %s14 = sshll.u32 %s13, 4
  %15 = dma.done [#allocation2], %s14
  %16 = vsyncmov [#allocation2]
  %s17 = vpop.sfrf %16
  %p18 = scmp.eq.s32.totalorder %s17, 0
  %p19 = pneg %p18
  %21 = shalt.err (%p19)

</llo_original>
